<compile_context>
chip_gen: v5e
topology: v5e:2x2
jax: 0.10.0
libtpu: 0.0.40
codegen_flags: <defaults>
</compile_context>

<pallas_src>
import functools

import jax
import jax.numpy as jnp
from jax import lax
from jax.experimental import pallas as pl
from jax.experimental.pallas import tpu as pltpu


def _round_up(x, m):
    return ((x + m - 1) // m) * m


def _cdiv(a, b):
    return (a + b - 1) // b


# ----------------------------------------------------------------------------
# Fused single-pass path: per-instance mean/var + normalize + affine.
#   x_ref: (R, HW)   wb_ref: (R, 2) [w | b]   o_ref: (R, HW)
# ----------------------------------------------------------------------------
def _adain_fused_kernel(x_ref, wb_ref, o_ref, *, inv_hw, eps):
    x = x_ref[...].astype(jnp.float32)                        # (R, HW)
    mean = jnp.sum(x, axis=1, keepdims=True) * inv_hw         # (R, 1)
    xc = x - mean
    var = jnp.sum(xc * xc, axis=1, keepdims=True) * inv_hw    # biased var (R, 1)
    a = wb_ref[:, 0:1] * lax.rsqrt(var + eps)                 # EUP rsqrt, affine fold
    c = wb_ref[:, 1:2] - mean * a
    o_ref[...] = (x * a + c).astype(o_ref.dtype)


# ----------------------------------------------------------------------------
# HW-tiled fallback (large feature maps): pass 1 accumulates sum / sum-of-sq
# over HW chunks and emits per-row (scale, shift); pass 2 applies them.
# NOTE: single-pass E[x^2]-E[x]^2 variance (clamped >= 0); acceptable here,
# the precision-critical path stays on the fused two-pass kernel.
# ----------------------------------------------------------------------------
def _adain_stats_kernel(x_ref, wb_ref, sc_ref, s_sum, s_sq, *,
                        inv_hw, eps, hw, hw_tile, need_mask):
    j = pl.program_id(1)

    @pl.when(j == 0)
    def _():
        s_sum[...] = jnp.zeros_like(s_sum)
        s_sq[...] = jnp.zeros_like(s_sq)

    x = x_ref[...].astype(jnp.float32)
    if need_mask:  # mask OOB lanes of the trailing HW chunk
        col = j * hw_tile + lax.broadcasted_iota(jnp.int32, x.shape, 1)
        x = jnp.where(col < hw, x, 0.0)
    s_sum[...] += jnp.sum(x, axis=1, keepdims=True)
    s_sq[...] += jnp.sum(x * x, axis=1, keepdims=True)

    @pl.when(j == pl.num_programs(1) - 1)
    def _():
        mean = s_sum[...] * inv_hw
        var = jnp.maximum(s_sq[...] * inv_hw - mean * mean, 0.0)
        a = wb_ref[:, 0:1] * lax.rsqrt(var + eps)
        c = wb_ref[:, 1:2] - mean * a
        sc_ref[:, 0:1] = a
        sc_ref[:, 1:2] = c


def _adain_apply_kernel(x_ref, sc_ref, o_ref):
    a = sc_ref[:, 0:1]
    c = sc_ref[:, 1:2]
    o_ref[...] = (x_ref[...].astype(jnp.float32) * a + c).astype(o_ref.dtype)


# ----------------------------------------------------------------------------
def adaptive_instance_norm_2d(x, weight, bias, *, eps=1e-5,
                              block_rows=None, max_block_bytes=None):
    """AdaIN forward: x (B,C,H,W), weight/bias (B*C,) or (B,C). Returns (B,C,H,W)."""
    B, C, H, W = x.shape
    M = B * C
    HW = H * W
    itemsize = jnp.dtype(x.dtype).itemsize
    row_mult = 16 if itemsize == 2 else 8       # native sublane packing

    x2 = x.reshape(M, HW)                        # NO padding, NO extra HBM copies
    wb = jnp.stack([weight.reshape(M).astype(jnp.float32),
                    bias.reshape(M).astype(jnp.float32)], axis=1)   # (M, 2)

    # --- VMEM budget (generation aware: v7x 64 MiB/TC, v5e/v6e 128 MiB) -----
    vmem_cap = 64 << 20                          # conservative default (v7x)
    try:
        info = pltpu.get_tpu_info()
        vmem_cap = int(getattr(info, "vmem_capacity_bytes", vmem_cap))
    except Exception:
        pass
    vmem_limit = max(32 << 20, min((vmem_cap * 3) // 4, 96 << 20))
    if max_block_bytes is None:
        # Soft cap on the input-dtype x block: ~4 MiB on v7x, ~8 MiB otherwise.
        max_block_bytes = (4 << 20) if vmem_cap <= (64 << 20) else (8 << 20)

    # Per-row footprint: 2x double-buffered in + out blocks (input dtype)
    # plus ~3 block-sized f32 temporaries inside the kernel.
    bytes_per_row = HW * (4 * itemsize + 3 * 4)
    rows_cap = min((vmem_limit * 4 // 5) // max(bytes_per_row, 1),
                   max_block_bytes // max(HW * itemsize, 1))

    cparams = lambda sem: pltpu.CompilerParams(       # noqa: E731
        dimension_semantics=sem, vmem_limit_bytes=int(vmem_limit))

    # ------------------------- fused single-pass path ------------------------
    if block_rows is not None or rows_cap >= min(row_mult, M):
        if block_rows is None:
            block_rows = max(row_mult, (rows_cap // row_mult) * row_mult)
            if M > 2 * row_mult:   # keep >=2 grid steps for megacore sharding
                block_rows = min(block_rows, _round_up(_cdiv(M, 2), row_mult))
        if block_rows >= M:
            block_rows = M         # full-dim block: no sublane divisibility needed
        grid = (_cdiv(M, block_rows),)

        out = pl.pallas_call(
            functools.partial(_adain_fused_kernel,
                              inv_hw=1.0 / float(HW), eps=float(eps)),
            out_shape=jax.ShapeDtypeStruct((M, HW), x.dtype),
            grid_spec=pltpu.PrefetchScalarGridSpec(
                num_scalar_prefetch=0,
                grid=grid,
                in_specs=[
                    pl.BlockSpec((block_rows, HW), lambda i: (i, 0)),
                    pl.BlockSpec((block_rows, 2), lambda i: (i, 0)),
                ],
                out_specs=pl.BlockSpec((block_rows, HW), lambda i: (i, 0)),
            ),
            compiler_params=cparams(("parallel",)),
        )(x2, wb)
        return out.reshape(B, C, H, W)

    # ---------------------- HW-tiled fallback (large H*W) --------------------
    block_rows_fb = min(row_mult, M)
    lane_budget = min(
        max_block_bytes // max(block_rows_fb * itemsize, 1),
        (vmem_limit * 4 // 5) // max(block_rows_fb * (4 * itemsize + 3 * 4), 1))
    hw_tile = max(128, (lane_budget // 128) * 128)
    if hw_tile >= HW:
        hw_tile = HW
    need_mask = (HW % hw_tile) != 0
    grid = (_cdiv(M, block_rows_fb), _cdiv(HW, hw_tile))

    sc = pl.pallas_call(
        functools.partial(_adain_stats_kernel, inv_hw=1.0 / float(HW),
                          eps=float(eps), hw=HW, hw_tile=hw_tile,
                          need_mask=need_mask),
        out_shape=jax.ShapeDtypeStruct((M, 2), jnp.float32),
        grid_spec=pltpu.PrefetchScalarGridSpec(
            num_scalar_prefetch=0,
            grid=grid,
            in_specs=[
                pl.BlockSpec((block_rows_fb, hw_tile), lambda i, j: (i, j)),
                pl.BlockSpec((block_rows_fb, 2), lambda i, j: (i, 0)),
            ],
            out_specs=pl.BlockSpec((block_rows_fb, 2), lambda i, j: (i, 0)),
            scratch_shapes=[pltpu.VMEM((block_rows_fb, 1), jnp.float32),
                            pltpu.VMEM((block_rows_fb, 1), jnp.float32)],
        ),
        compiler_params=cparams(("parallel", "arbitrary")),
    )(x2, wb)

    out = pl.pallas_call(
        _adain_apply_kernel,
        out_shape=jax.ShapeDtypeStruct((M, HW), x.dtype),
        grid_spec=pltpu.PrefetchScalarGridSpec(
            num_scalar_prefetch=0,
            grid=grid,
            in_specs=[
                pl.BlockSpec((block_rows_fb, hw_tile), lambda i, j: (i, j)),
                pl.BlockSpec((block_rows_fb, 2), lambda i, j: (i, 0)),
            ],
            out_specs=pl.BlockSpec((block_rows_fb, hw_tile), lambda i, j: (i, j)),
        ),
        compiler_params=cparams(("parallel", "parallel")),
    )(x2, sc)
    return out.reshape(B, C, H, W)


# ----------------------------------------------------------------------------
# Pure-JAX reference (mirrors F.batch_norm(training=True) on the (1, B*C, H, W)
# view: per-(b,c) biased statistics over H*W).
# ----------------------------------------------------------------------------
def adain_reference(x, weight, bias, eps=1e-5):
    B, C, H, W = x.shape
    xr = x.reshape(B * C, H * W).astype(jnp.float32)
    mean = xr.mean(axis=1, keepdims=True)
    var = ((xr - mean) ** 2).mean(axis=1, keepdims=True)
    w = weight.reshape(B * C, 1).astype(jnp.float32)
    b = bias.reshape(B * C, 1).astype(jnp.float32)
    out = (xr - mean) / jnp.sqrt(var + eps) * w + b
    return out.reshape(B, C, H, W).astype(x.dtype)


# ----------------------------------------------------------------------------
if __name__ == "__main__":
    key = jax.random.PRNGKey(0)
    keys = jax.random.split(key, 12)

    # Test 1: aligned shapes (B*C multiple of 8, H*W multiple of 128).
    B, C, H, W = 2, 4, 16, 16
    x = jax.random.normal(keys[0], (B, C, H, W), jnp.float32)
    weight = 1.0 + 0.5 * jax.random.normal(keys[1], (B * C,), jnp.float32)
    bias = 0.5 * jax.random.normal(keys[2], (B * C,), jnp.float32)
    out = jax.block_until_ready(adaptive_instance_norm_2d(x, weight, bias))
    ref = adain_reference(x, weight, bias)
    assert out.shape == (B, C, H, W)
    assert bool(jnp.all(jnp.isfinite(out)))
    assert bool(jnp.allclose(out, ref, atol=1e-4, rtol=1e-4)), \
        float(jnp.max(jnp.abs(out - ref)))

    # Test 2: fully unaligned shapes (M=6 not multiple of 8, HW=70 not of 128).
    B2, C2, H2, W2 = 2, 3, 10, 7
    x_u = jax.random.normal(keys[3], (B2, C2, H2, W2), jnp.float32)
    w_u = 1.0 + 0.5 * jax.random.normal(keys[4], (B2 * C2,), jnp.float32)
    b_u = 0.5 * jax.random.normal(keys[5], (B2 * C2,), jnp.float32)
    out_u = jax.block_until_ready(adaptive_instance_norm_2d(x_u, w_u, b_u))
    ref_u = adain_reference(x_u, w_u, b_u)
    assert bool(jnp.allclose(out_u, ref_u, atol=1e-4, rtol=1e-4)), \
        float(jnp.max(jnp.abs(out_u - ref_u)))

    # Test 3: bf16 activations (stats still computed in f32 inside the kernel).
    x_bf = x.astype(jnp.bfloat16)
    out_bf = jax.block_until_ready(adaptive_instance_norm_2d(x_bf, weight, bias))
    ref_bf = adain_reference(x_bf.astype(jnp.float32), weight, bias)
    assert out_bf.dtype == jnp.bfloat16
    assert bool(jnp.allclose(out_bf.astype(jnp.float32), ref_bf, atol=5e-2, rtol=5e-2))

    # Test 4: multi-step grid with a partial trailing row block (M=21, block=8)
    # -> verifies the unpadded boundary-block masking (no pad / no slice).
    B4, C4, H4, W4 = 3, 7, 8, 16
    x4 = jax.random.normal(keys[6], (B4, C4, H4, W4), jnp.float32)
    w4 = 1.0 + 0.5 * jax.random.normal(keys[7], (B4 * C4,), jnp.float32)
    b4 = 0.5 * jax.random.normal(keys[8], (B4 * C4,), jnp.float32)
    out4 = jax.block_until_ready(
        adaptive_instance_norm_2d(x4, w4, b4, block_rows=8))
    ref4 = adain_reference(x4, w4, b4)
    assert bool(jnp.allclose(out4, ref4, atol=1e-4, rtol=1e-4)), \
        float(jnp.max(jnp.abs(out4 - ref4)))

    # Test 5: force the HW-tiled fallback path (tiny block budget) with an
    # HW that is not a multiple of the lane tile (exercises in-kernel masking).
    B5, C5, H5, W5 = 2, 4, 20, 33
    x5 = jax.random.normal(keys[9], (B5, C5, H5, W5), jnp.float32)
    w5 = 1.0 + 0.5 * jax.random.normal(keys[10], (B5 * C5,), jnp.float32)
    b5 = 0.5 * jax.random.normal(keys[11], (B5 * C5,), jnp.float32)
    out5 = jax.block_until_ready(
        adaptive_instance_norm_2d(x5, w5, b5, max_block_bytes=8 * 256 * 4))
    ref5 = adain_reference(x5, w5, b5)
    assert bool(jnp.allclose(out5, ref5, atol=2e-3, rtol=2e-3)), \
        float(jnp.max(jnp.abs(out5 - ref5)))

    print("KERNEL_OK")
</pallas_src>

<mosaic_0001>
module attributes {stable_mosaic.version = 11 : i64} {
  func.func @_adain_fused_kernel(%arg0: i32, %arg1: memref<8x256xf32, #tpu.memory_space<vmem>>, %arg2: memref<8x2xf32, #tpu.memory_space<vmem>>, %arg3: memref<8x256xf32, #tpu.memory_space<vmem>>) attributes {dimension_semantics = [#tpu.dimension_semantics<parallel>], iteration_bounds = array<i64: 1>, scalar_prefetch = 0 : i64, scratch_operands = 0 : i64, tpu.core_type = #tpu.core_type<tc>, window_params = [{transform_indices = @transform_0, window_bounds = array<i64: 8, 256>}, {transform_indices = @transform_1, window_bounds = array<i64: 8, 2>}, {transform_indices = @transform_2, window_bounds = array<i64: 8, 256>}]} {
    %c0 = arith.constant 0 : index
    %c0_0 = arith.constant 0 : index
    %0 = vector.load %arg1[%c0, %c0_0] : memref<8x256xf32, #tpu.memory_space<vmem>>, vector<8x256xf32>
    %cst = arith.constant dense<0.000000e+00> : vector<8xf32>
    %1 = vector.multi_reduction <add>, %0, %cst [1] : vector<8x256xf32> to vector<8xf32>
    %2 = vector.shape_cast %1 : vector<8xf32> to vector<8x1xf32>
    %cst_1 = arith.constant 3.906250e-03 : f32
    %3 = vector.broadcast %cst_1 : f32 to vector<8x1xf32>
    %4 = arith.mulf %2, %3 : vector<8x1xf32>
    %5 = vector.broadcast %4 : vector<8x1xf32> to vector<8x256xf32>
    %6 = arith.subf %0, %5 : vector<8x256xf32>
    %7 = arith.mulf %6, %6 : vector<8x256xf32>
    %cst_2 = arith.constant dense<0.000000e+00> : vector<8xf32>
    %8 = vector.multi_reduction <add>, %7, %cst_2 [1] : vector<8x256xf32> to vector<8xf32>
    %9 = vector.shape_cast %8 : vector<8xf32> to vector<8x1xf32>
    %cst_3 = arith.constant 3.906250e-03 : f32
    %10 = vector.broadcast %cst_3 : f32 to vector<8x1xf32>
    %11 = arith.mulf %9, %10 : vector<8x1xf32>
    %c0_4 = arith.constant 0 : index
    %c0_5 = arith.constant 0 : index
    %12 = vector.load %arg2[%c0_4, %c0_5] : memref<8x2xf32, #tpu.memory_space<vmem>>, vector<8x1xf32>
    %cst_6 = arith.constant 9.99999974E-6 : f32
    %13 = vector.broadcast %cst_6 : f32 to vector<8x1xf32>
    %14 = arith.addf %11, %13 : vector<8x1xf32>
    %15 = math.rsqrt %14 : vector<8x1xf32>
    %16 = arith.mulf %12, %15 : vector<8x1xf32>
    %c0_7 = arith.constant 0 : index
    %c1 = arith.constant 1 : index
    %17 = vector.load %arg2[%c0_7, %c1] : memref<8x2xf32, #tpu.memory_space<vmem>>, vector<8x1xf32>
    %18 = arith.mulf %4, %16 : vector<8x1xf32>
    %19 = arith.subf %17, %18 : vector<8x1xf32>
    %20 = vector.broadcast %16 : vector<8x1xf32> to vector<8x256xf32>
    %21 = arith.mulf %0, %20 : vector<8x256xf32>
    %22 = vector.broadcast %19 : vector<8x1xf32> to vector<8x256xf32>
    %23 = arith.addf %21, %22 : vector<8x256xf32>
    %c0_8 = arith.constant 0 : index
    %c0_9 = arith.constant 0 : index
    %24 = vector.load %arg3[%c0_8, %c0_9] : memref<8x256xf32, #tpu.memory_space<vmem>>, vector<8x256xf32>
    tpu.vector_store %arg3[%c0_8, %c0_9], %23 {strides = array<i32>} : memref<8x256xf32, #tpu.memory_space<vmem>>, vector<8x256xf32>,
    return
  }
  func.func @transform_0(%arg0: i32) -> (i32, i32) {
    %c0_i32 = arith.constant 0 : i32
    %c0_i32_0 = arith.constant 0 : i32
    return %arg0, %c0_i32 : i32, i32
  }
  func.func @transform_1(%arg0: i32) -> (i32, i32) {
    %c0_i32 = arith.constant 0 : i32
    %c0_i32_0 = arith.constant 0 : i32
    return %arg0, %c0_i32 : i32, i32
  }
  func.func @transform_2(%arg0: i32) -> (i32, i32) {
    %c0_i32 = arith.constant 0 : i32
    %c0_i32_0 = arith.constant 0 : i32
    return %arg0, %c0_i32 : i32, i32
  }
}

</mosaic_0001>

<llo_original>
// kernel: tpu_custom_call.1
$region0: #{tpu_custom_call.1}
  #allocation0 [shape = 'u32[]', space=smem, size = 0x4, offset = 0x4, fixed_abs, tag = 'smem constant byte address 0x4 - core index']
  #allocation1 [shape = 'u32[72,128]{1,0:T(1,128)}', space=vmem, size = 0x9000, scoped, tag = 'internal scratch']
  %s0 = inlined_call_operand.hbm [shape: f32[8,256], index: 0, kind: input, shape index: {}]
  %s1 = inlined_call_operand.vmem [shape: f32[8,2], index: 1, kind: input, shape index: {}]
  %s2 = inlined_call_operand.hbm [shape: f32[8,256], index: 2, kind: output, shape index: {}]
  %s3 = sld [smem:[#allocation0]]
  $region22: #{tpu_custom_call.1} parent=0
    _
  %s5 = ssub.s32 1, %s3
  %s6 = scalar_select 0, %s5, %s3
  $region1: #{tpu_custom_call.1} parent=0
    #allocation2 [shape = 'u8[8192]{0}', space=vmem, size = 0x2000, scoped, tag = 'input window, operand 0, single buffered']
    #allocation3 [shape = 's32[1]{0}', space=sflag, size = 0x4, scoped, tag = 'scoped memory for tpu_custom_call.1']
    #allocation4 [shape = 's32[1]{0}', space=sflag, size = 0x4, scoped, tag = 'scoped memory for tpu_custom_call.1']
    #allocation5 [shape = 'u8[8192]{0}', space=vmem, size = 0x2000, scoped, tag = 'output window, operand 0, single buffered']
    %7 = vsyncpa [#allocation3], 0
    %8 = vsyncpa [#allocation4], 0
    // Predicated region
    $region2: #{tpu_custom_call.1} parent=1 // pred_check
      _
    $region3: #{tpu_custom_call.1} parent=1 // pred_check_branch
      %10 = sbr.rel (0) target = $region5
    $region4: #{tpu_custom_call.1} parent=1 // pred_region
      %12 = vsyncadd [#allocation3], 0
      %s14 = sshll.u32 %s0, 4
      %s15 = int_to_ptr.hbm [resolvable:$true] %s14
      %s16 = sshll.u32 [#allocation2], 4
      %s17 = int_to_ptr.vmem [resolvable:$true] %s16
      %19 = dma.hbm_to_vmem [thread:$0]  %s15, 256, %s17, [#allocation3]
    $region5: #{tpu_custom_call.1} parent=1 // pred_fallthru
      _
    // Predicated region
    $region6: #{tpu_custom_call.1} parent=1 // pred_check
      _
    $region7: #{tpu_custom_call.1} parent=1 // pred_check_branch
      %21 = sbr.rel (0) target = $region9
    $region8: #{tpu_custom_call.1} parent=1 // pred_region
      _
    $region9: #{tpu_custom_call.1} parent=1 // pred_fallthru
      _
    // Predicated region
    $region10: #{tpu_custom_call.1} parent=1 // pred_check
      _
    $region11: #{tpu_custom_call.1} parent=1 // pred_check_branch
      %23 = sbr.rel (0) target = $region13
    $region12: #{tpu_custom_call.1} parent=1 // pred_region
      %25 = dma.done [#allocation3], 256
    $region13: #{tpu_custom_call.1} parent=1 // pred_fallthru
      _
    %v26 = vld [vmem:[#allocation2] sm:$0xff]
    %v27 = vld [vmem:[#allocation2 + $0x8] sm:$0xff]
    %v28 = vadd.f32 %v26, %v27
    %29 = vadd.xlane.f32.xlu0 %v28
    %v30 = vpop.xlane.xlu0 %29
    %v31 = vmul.f32 %v30, 0.00390625
    %v32 = vsub.f32 %v26, %v31
    %v33 = vsub.f32 %v27, %v31
    %v34 = vmul.f32 %v32, %v32
    %v35 = vmul.f32 %v33, %v33
    %v36 = vadd.f32 %v34, %v35
    %37 = vadd.xlane.f32.xlu0 %v36
    %v38 = vpop.xlane.xlu0 %37
    %v39 = vmul.f32 %v38, 0.00390625
    %v40 = vld [vmem:[%s1] sm:$0xff]
    %v41 = vadd.f32 %v39, 1e-05
    %v42 = vrsqrt.pop %v41
    %v43 = vmul.f32 %v42, %v41
    %v44 = vmul.f32 %v43, %v42
    %v45 = vmul.f32 0.5, %v44
    %v46 = vsub.f32 1.5, %v45
    %v47 = vmul.f32 %v42, %v46
    %vm48 = vweird.f32 %v41
    %vm49 = vweird.f32 %v42
    %vm50 = vmor %vm48, %vm49
    %v51 = vsel %vm50, %v42, %v47
    %v52 = vmul.f32 %v40, %v51
    %v53 = vmul.f32 %v31, %v52
    %55 = vrot.lane.b32.xlu0 %v53, 1
    %v56 = vpop.permute.xlu0 %55
    %v58 = vsub.f32 %v40, %v56
    %60 = vset.pattern.permute.xlu0 0
    %61 = vperm.xlu0 %60, %v52
    %v62 = vpop.permute.xlu0 %61
    %v64 = vmul.f32 %v26, %v62
    %v65 = vmul.f32 %v27, %v62
    %67 = vset.pattern.permute.xlu0 1
    %68 = vperm.xlu0 %67, %v58
    %v69 = vpop.permute.xlu0 %68
    %v71 = vadd.f32 %v64, %v69
    %v72 = vadd.f32 %v65, %v69
    %73 = vst [vmem:[#allocation5] sm:$0xff] %v71
    %74 = vst [vmem:[#allocation5 + $0x8] sm:$0xff] %v72
    // Predicated region
    $region14: #{tpu_custom_call.1} parent=1 // pred_check
      _
    $region15: #{tpu_custom_call.1} parent=1 // pred_check_branch
      %76 = sbr.rel (0) target = $region17
    $region16: #{tpu_custom_call.1} parent=1 // pred_region
      %78 = vsyncadd [#allocation4], 0
      %s80 = sshll.u32 [#allocation5], 4
      %s81 = int_to_ptr.vmem [resolvable:$true] %s80
      %s82 = sshll.u32 %s2, 4
      %s83 = int_to_ptr.hbm [resolvable:$true] %s82
      %85 = dma.vmem_to_hbm [thread:$0]  %s81, 256, %s83, [#allocation4]
    $region17: #{tpu_custom_call.1} parent=1 // pred_fallthru
      _
    // Predicated region
    $region18: #{tpu_custom_call.1} parent=1 // pred_check
      _
    $region19: #{tpu_custom_call.1} parent=1 // pred_check_branch
      %87 = sbr.rel (0) target = $region21
    $region20: #{tpu_custom_call.1} parent=1 // pred_region
      %89 = dma.done [#allocation4], 256
    $region21: #{tpu_custom_call.1} parent=1 // pred_fallthru
      _
    %90 = vsyncpa [#allocation3], 1
    %91 = vsyncpa [#allocation4], 1

</llo_original>
